<compile_context>
chip_gen: v7x
topology: tpu7x:2x2x1
jax: 0.10.0
libtpu: 0.0.40
codegen_flags: <defaults>
</compile_context>

<pallas_src>
import functools

import jax
import jax.numpy as jnp
from jax.experimental import pallas as pl
from jax.experimental.pallas import tpu as pltpu


TILE_B_MAX = 4096          # sweepable: 2048/4096/8192; 4096 is the safe cross-gen point
VMEM_LIMIT_BYTES = 48 * 1024 * 1024   # > v5e's 16 MiB scoped default, < v7x's 64 MiB


def _round_up(n: int, m: int) -> int:
    return ((n + m - 1) // m) * m


def _has_native_bf16_vpu() -> bool:
    """bf16 elementwise epilogue only pays off on v6e/v7x (v5e has no bf16 VALU)."""
    try:
        kind = jax.devices()[0].device_kind.lower()
    except Exception:
        return False
    return ("v6" in kind) or ("v7" in kind)


_NATIVE_BF16_VPU = _has_native_bf16_vpu()


def _discriminator_kernel(x_ref, w1_ref, b1_ref, w2_ref, b2_ref, w3_ref, b3_ref,
                          o_ref, *, epilogue_dtype):
    # x is streamed in f32; cast to the MXU operand dtype here on the VPU (hidden
    # under the x DMA) instead of paying a separate XLA pass over x in HBM.
    xw = x_ref[...]
    if xw.dtype != w1_ref.dtype:
        xw = xw.astype(w1_ref.dtype)

    # fc1: (tile_b, K) @ (K, 4H) on the MXU, f32 accumulation.
    h1 = jnp.dot(xw, w1_ref[...], preferred_element_type=jnp.float32)
    # Epilogue (bias + LeakyReLU) in bf16 on v6e/v7x, f32 otherwise.  b1 is pre-cast.
    h1 = h1.astype(epilogue_dtype) + b1_ref[...]
    h1 = jnp.maximum(h1, 0.2 * h1)                 # LeakyReLU(0.2), single max
    h1 = h1.astype(w2_ref.dtype)                   # no-op when epilogue is already bf16

    # fc2: (tile_b, 4H) @ (4H, H) on the MXU, f32 accumulation; f32 epilogue (4x smaller).
    h2 = jnp.dot(h1, w2_ref[...], preferred_element_type=jnp.float32)
    h2 = h2 + b2_ref[...]
    h2 = jnp.maximum(h2, 0.2 * h2)

    # fc3 (out width 1): keep it off the MXU -- VPU multiply + XLU lane reduction.
    h3 = jnp.sum(h2 * w3_ref[...], axis=-1, keepdims=True) + b3_ref[...]

    # Sigmoid: exp + approximate reciprocal, both issue on the EUP slot.
    p = pl.reciprocal(1.0 + jnp.exp(-h3), approx=True)
    o_ref[...] = p.astype(o_ref.dtype)


def _pick_tile_b(batch: int) -> int:
    # >= 2 grid steps when possible (v7x has 2 TensorCores), tile rows a multiple of 8,
    # capped so per-tile intermediates stay well under the VMEM limit.
    half = _round_up(max(pl.cdiv(batch, 2), 1), 8)
    return max(8, min(TILE_B_MAX, half))


@functools.partial(jax.jit, static_argnames=("compute_dtype",))
def discriminator_forward(x, params, compute_dtype=jnp.bfloat16):
    """x: (B, input_size) float32. Returns (B, 1) float32 in (0, 1)."""
    w1, b1, w2, b2, w3, b3 = params
    B, input_size = x.shape
    h4 = w1.shape[1]        # hidden_size * 4
    h = w2.shape[1]         # hidden_size

    tile_b = _pick_tile_b(B)
    grid = (pl.cdiv(B, tile_b),)   # ragged last block; OOB output rows are masked

    use_bf16_epi = (jnp.dtype(compute_dtype) == jnp.dtype(jnp.bfloat16)
                    and _NATIVE_BF16_VPU)
    epi_dtype = jnp.bfloat16 if use_bf16_epi else jnp.float32

    # Weights/biases are tiny; casting them in the wrapper is negligible.
    w1c = w1.astype(compute_dtype)
    w2c = w2.astype(compute_dtype)
    b1c = b1.astype(epi_dtype)

    const = lambda i: (0, 0)   # constant block index -> weights stay VMEM-resident

    kernel = functools.partial(_discriminator_kernel, epilogue_dtype=epi_dtype)

    out = pl.pallas_call(
        kernel,
        out_shape=jax.ShapeDtypeStruct((B, 1), jnp.float32),
        grid=grid,
        in_specs=[
            pl.BlockSpec((tile_b, input_size), lambda i: (i, 0)),   # x: streamed (f32)
            pl.BlockSpec((input_size, h4), const),                  # w1
            pl.BlockSpec((1, h4), const),                           # b1 (epilogue dtype)
            pl.BlockSpec((h4, h), const),                           # w2
            pl.BlockSpec((1, h), const),                            # b2
            pl.BlockSpec((1, h), const),                            # w3 (row vector)
            pl.BlockSpec((1, 1), const),                            # b3
        ],
        out_specs=pl.BlockSpec((tile_b, 1), lambda i: (i, 0)),
        compiler_params=pltpu.CompilerParams(
            dimension_semantics=("parallel",),      # shard batch tiles across TCs (v7x)
            vmem_limit_bytes=VMEM_LIMIT_BYTES),
    )(x, w1c, b1c, w2c, b2, w3, b3)
    return out


def init_discriminator_params(key, input_size, hidden_size):
    """nn.Linear-style U(-1/sqrt(fan_in), 1/sqrt(fan_in)) init.

    Layout (TPU-friendly, differs from PyTorch):
      w1, w2 : (in_features, out_features)   -- transposed vs PyTorch
      w3     : (1, in_features)              -- fc3 has out_features = 1, stored as a row
      biases : (1, out_features)
    """
    dims = [(input_size, hidden_size * 4),
            (hidden_size * 4, hidden_size),
            (hidden_size, 1)]
    params = []
    for li, (fan_in, fan_out) in enumerate(dims):
        key, kw, kb = jax.random.split(key, 3)
        bound = 1.0 / jnp.sqrt(jnp.float32(fan_in))
        w = jax.random.uniform(kw, (fan_in, fan_out), jnp.float32, -bound, bound)
        if li == 2:
            w = w.T            # fc3 weight stored as a (1, hidden) row
        b = jax.random.uniform(kb, (1, fan_out), jnp.float32, -bound, bound)
        params += [w, b]
    return tuple(params)


def _reference_forward_f32(x, params):
    """Pure-f32 reference matching the PyTorch module semantics."""
    w1, b1, w2, b2, w3, b3 = params
    h = x @ w1 + b1
    h = jnp.where(h > 0, h, 0.2 * h)
    h = h @ w2 + b2
    h = jnp.where(h > 0, h, 0.2 * h)
    return jax.nn.sigmoid(h @ w3.T + b3)


def _reference_forward_matched(x, params, compute_dtype):
    """Reference with the kernel's dtype policy (narrow MXU operands, f32 accumulation,
    f32 elementwise) but an exact sigmoid."""
    w1, b1, w2, b2, w3, b3 = params
    h = jnp.dot(x.astype(compute_dtype), w1.astype(compute_dtype),
                preferred_element_type=jnp.float32) + b1
    h = jnp.where(h > 0, h, 0.2 * h)
    h = jnp.dot(h.astype(compute_dtype), w2.astype(compute_dtype),
                preferred_element_type=jnp.float32) + b2
    h = jnp.where(h > 0, h, 0.2 * h)
    h3 = jnp.sum(h * w3, axis=-1, keepdims=True) + b3
    return jax.nn.sigmoid(h3)


if __name__ == "__main__":
    key = jax.random.PRNGKey(0)
    input_size = 16
    hidden_size = 32          # fc1 out = 128, fc2 out = 32, fc3 out = 1

    kx, kx2, kp = jax.random.split(key, 3)
    params = init_discriminator_params(kp, input_size, hidden_size)

    # Small batch: single (possibly ragged) tile.
    x_small = jax.random.normal(kx, (8, input_size), jnp.float32)
    out_small = jax.block_until_ready(discriminator_forward(x_small, params))

    # Larger batch: exercises the multi-tile grid + ragged last block (1000 -> 2 x 504).
    x_big = jax.random.normal(kx2, (1000, input_size), jnp.float32)
    out_big = jax.block_until_ready(discriminator_forward(x_big, params))

    for x, out in ((x_small, out_small), (x_big, out_big)):
        assert out.shape == (x.shape[0], 1), out.shape
        assert bool(jnp.all(jnp.isfinite(out)))
        ref_m = _reference_forward_matched(x, params, jnp.bfloat16)
        ref_f = _reference_forward_f32(x, params)
        # Tight check vs the same-dtype-policy reference (slack only for the
        # approximate-reciprocal sigmoid and the bf16 fc1 epilogue on v6e/v7x).
        err_m = float(jnp.max(jnp.abs(out - ref_m)))
        assert err_m < 2e-2, err_m
        # Sanity check vs the pure-f32 reference (slack for bf16 operand rounding).
        err_f = float(jnp.max(jnp.abs(out - ref_f)))
        assert err_f < 5e-2, err_f

    print("KERNEL_OK")
</pallas_src>

<mosaic_0001>
module attributes {stable_mosaic.version = 11 : i64} {
  func.func @_discriminator_kernel(%arg0: i32, %arg1: memref<8x16xf32, #tpu.memory_space<vmem>>, %arg2: memref<16x128xbf16, #tpu.memory_space<vmem>>, %arg3: memref<1x128xf32, #tpu.memory_space<vmem>>, %arg4: memref<128x32xbf16, #tpu.memory_space<vmem>>, %arg5: memref<1x32xf32, #tpu.memory_space<vmem>>, %arg6: memref<1x32xf32, #tpu.memory_space<vmem>>, %arg7: memref<1x1xf32, #tpu.memory_space<vmem>>, %arg8: memref<8x1xf32, #tpu.memory_space<vmem>>) attributes {dimension_semantics = [#tpu.dimension_semantics<parallel>], iteration_bounds = array<i64: 1>, scalar_prefetch = 0 : i64, scratch_operands = 0 : i64, tpu.core_type = #tpu.core_type<tc>, window_params = [{transform_indices = @transform_0, window_bounds = array<i64: 8, 16>}, {pipeline_mode = #tpu.pipeline_mode<synchronous>, transform_indices = @transform_1, window_bounds = array<i64: 16, 128>}, {pipeline_mode = #tpu.pipeline_mode<synchronous>, transform_indices = @transform_2, window_bounds = array<i64: 1, 128>}, {pipeline_mode = #tpu.pipeline_mode<synchronous>, transform_indices = @transform_3, window_bounds = array<i64: 128, 32>}, {pipeline_mode = #tpu.pipeline_mode<synchronous>, transform_indices = @transform_4, window_bounds = array<i64: 1, 32>}, {pipeline_mode = #tpu.pipeline_mode<synchronous>, transform_indices = @transform_5, window_bounds = array<i64: 1, 32>}, {pipeline_mode = #tpu.pipeline_mode<synchronous>, transform_indices = @transform_6, window_bounds = array<i64: 1, 1>}, {transform_indices = @transform_7, window_bounds = array<i64: 8, 1>}]} {
    %c0 = arith.constant 0 : index
    %c0_0 = arith.constant 0 : index
    %0 = vector.load %arg1[%c0, %c0_0] : memref<8x16xf32, #tpu.memory_space<vmem>>, vector<8x16xf32>
    %1 = arith.truncf %0 : vector<8x16xf32> to vector<8x16xbf16>
    %c0_1 = arith.constant 0 : index
    %c0_2 = arith.constant 0 : index
    %2 = vector.load %arg2[%c0_1, %c0_2] : memref<16x128xbf16, #tpu.memory_space<vmem>>, vector<16x128xbf16>
    %cst = arith.constant dense<0.000000e+00> : vector<8x128xf32>
    %3 = tpu.matmul %1, %2, %cst {dimension_numbers = #tpu.dot_dimension_numbers<[1], [0], [0], [1], [0, 0, 1, 1], [], []>} : vector<8x16xbf16>, vector<16x128xbf16>, vector<8x128xf32> -> vector<8x128xf32>
    %c0_3 = arith.constant 0 : index
    %c0_4 = arith.constant 0 : index
    %4 = vector.load %arg3[%c0_3, %c0_4] : memref<1x128xf32, #tpu.memory_space<vmem>>, vector<1x128xf32>
    %5 = vector.broadcast %4 : vector<1x128xf32> to vector<8x128xf32>
    %6 = arith.addf %3, %5 : vector<8x128xf32>
    %cst_5 = arith.constant 2.000000e-01 : f32
    %7 = vector.broadcast %cst_5 : f32 to vector<8x128xf32>
    %8 = arith.mulf %7, %6 : vector<8x128xf32>
    %9 = arith.maximumf %6, %8 : vector<8x128xf32>
    %10 = arith.truncf %9 : vector<8x128xf32> to vector<8x128xbf16>
    %c0_6 = arith.constant 0 : index
    %c0_7 = arith.constant 0 : index
    %11 = vector.load %arg4[%c0_6, %c0_7] : memref<128x32xbf16, #tpu.memory_space<vmem>>, vector<128x32xbf16>
    %cst_8 = arith.constant dense<0.000000e+00> : vector<8x32xf32>
    %12 = tpu.matmul %10, %11, %cst_8 {dimension_numbers = #tpu.dot_dimension_numbers<[1], [0], [0], [1], [0, 0, 1, 1], [], []>} : vector<8x128xbf16>, vector<128x32xbf16>, vector<8x32xf32> -> vector<8x32xf32>
    %c0_9 = arith.constant 0 : index
    %c0_10 = arith.constant 0 : index
    %13 = vector.load %arg5[%c0_9, %c0_10] : memref<1x32xf32, #tpu.memory_space<vmem>>, vector<1x32xf32>
    %14 = vector.broadcast %13 : vector<1x32xf32> to vector<8x32xf32>
    %15 = arith.addf %12, %14 : vector<8x32xf32>
    %cst_11 = arith.constant 2.000000e-01 : f32
    %16 = vector.broadcast %cst_11 : f32 to vector<8x32xf32>
    %17 = arith.mulf %16, %15 : vector<8x32xf32>
    %18 = arith.maximumf %15, %17 : vector<8x32xf32>
    %c0_12 = arith.constant 0 : index
    %c0_13 = arith.constant 0 : index
    %19 = vector.load %arg6[%c0_12, %c0_13] : memref<1x32xf32, #tpu.memory_space<vmem>>, vector<1x32xf32>
    %20 = vector.broadcast %19 : vector<1x32xf32> to vector<8x32xf32>
    %21 = arith.mulf %18, %20 : vector<8x32xf32>
    %cst_14 = arith.constant dense<0.000000e+00> : vector<8xf32>
    %22 = vector.multi_reduction <add>, %21, %cst_14 [1] : vector<8x32xf32> to vector<8xf32>
    %23 = vector.shape_cast %22 : vector<8xf32> to vector<8x1xf32>
    %c0_15 = arith.constant 0 : index
    %c0_16 = arith.constant 0 : index
    %24 = vector.load %arg7[%c0_15, %c0_16] : memref<1x1xf32, #tpu.memory_space<vmem>>, vector<1x1xf32>
    %25 = vector.broadcast %24 : vector<1x1xf32> to vector<8x1xf32>
    %26 = arith.addf %23, %25 : vector<8x1xf32>
    %cst_17 = arith.constant 0.000000e+00 : f32
    %27 = vector.broadcast %cst_17 : f32 to vector<8x1xf32>
    %28 = arith.subf %27, %26 : vector<8x1xf32>
    %29 = math.exp %28 : vector<8x1xf32>
    %cst_18 = arith.constant 1.000000e+00 : f32
    %30 = vector.broadcast %cst_18 : f32 to vector<8x1xf32>
    %31 = arith.addf %30, %29 : vector<8x1xf32>
    %32 = tpu.reciprocal %31 {approx = true} : vector<8x1xf32> -> vector<8x1xf32>
    %c0_19 = arith.constant 0 : index
    %c0_20 = arith.constant 0 : index
    %33 = vector.load %arg8[%c0_19, %c0_20] : memref<8x1xf32, #tpu.memory_space<vmem>>, vector<8x1xf32>
    tpu.vector_store %arg8[%c0_19, %c0_20], %32 {strides = array<i32>} : memref<8x1xf32, #tpu.memory_space<vmem>>, vector<8x1xf32>,
    return
  }
  func.func @transform_0(%arg0: i32) -> (i32, i32) {
    %c0_i32 = arith.constant 0 : i32
    %c0_i32_0 = arith.constant 0 : i32
    return %arg0, %c0_i32 : i32, i32
  }
  func.func @transform_1(%arg0: i32) -> (i32, i32) {
    %c0_i32 = arith.constant 0 : i32
    %c0_i32_0 = arith.constant 0 : i32
    %c0_i32_1 = arith.constant 0 : i32
    return %c0_i32, %c0_i32_0 : i32, i32
  }
  func.func @transform_2(%arg0: i32) -> (i32, i32) {
    %c0_i32 = arith.constant 0 : i32
    %c0_i32_0 = arith.constant 0 : i32
    %c0_i32_1 = arith.constant 0 : i32
    return %c0_i32, %c0_i32_0 : i32, i32
  }
  func.func @transform_3(%arg0: i32) -> (i32, i32) {
    %c0_i32 = arith.constant 0 : i32
    %c0_i32_0 = arith.constant 0 : i32
    %c0_i32_1 = arith.constant 0 : i32
    return %c0_i32, %c0_i32_0 : i32, i32
  }
  func.func @transform_4(%arg0: i32) -> (i32, i32) {
    %c0_i32 = arith.constant 0 : i32
    %c0_i32_0 = arith.constant 0 : i32
    %c0_i32_1 = arith.constant 0 : i32
    return %c0_i32, %c0_i32_0 : i32, i32
  }
  func.func @transform_5(%arg0: i32) -> (i32, i32) {
    %c0_i32 = arith.constant 0 : i32
    %c0_i32_0 = arith.constant 0 : i32
    %c0_i32_1 = arith.constant 0 : i32
    return %c0_i32, %c0_i32_0 : i32, i32
  }
  func.func @transform_6(%arg0: i32) -> (i32, i32) {
    %c0_i32 = arith.constant 0 : i32
    %c0_i32_0 = arith.constant 0 : i32
    %c0_i32_1 = arith.constant 0 : i32
    return %c0_i32, %c0_i32_0 : i32, i32
  }
  func.func @transform_7(%arg0: i32) -> (i32, i32) {
    %c0_i32 = arith.constant 0 : i32
    %c0_i32_0 = arith.constant 0 : i32
    return %arg0, %c0_i32 : i32, i32
  }
}

</mosaic_0001>

<llo_original>
// kernel: discriminator_forward.1
$region0: #{discriminator_forward.1}
  #allocation0 [shape = 'u32[]', space=smem, size = 0x4, offset = 0x4, fixed_abs, tag = 'smem constant byte address 0x4 - core index']
  #allocation1 [shape = 'u32[144,128]{1,0:T(1,128)}', space=vmem, size = 0x12000, scoped, tag = 'internal scratch']
  #allocation2 [shape = 'f32[1,1]{1,0:T(1,128)S(1)}', space=vmem, size = 0x200, scoped, tag = 'scoped memory for discriminator_forward.1']
  %s0 = inlined_call_operand.vmem [shape: f32[8,16], index: 0, kind: input, shape index: {}]
  %s1 = inlined_call_operand.vmem [shape: bf16[16,128], index: 1, kind: input, shape index: {}]
  %s2 = inlined_call_operand.vmem [shape: f32[1,128], index: 2, kind: input, shape index: {}]
  %s3 = inlined_call_operand.vmem [shape: bf16[128,32], index: 3, kind: input, shape index: {}]
  %s4 = inlined_call_operand.vmem [shape: f32[1,32], index: 4, kind: input, shape index: {}]
  %s5 = inlined_call_operand.vmem [shape: f32[1,32], index: 5, kind: input, shape index: {}]
  %s6 = inlined_call_operand.<no memory space> [shape: f32[1,1], index: 6, kind: input, shape index: {}]
  %s7 = inlined_call_operand.vmem [shape: f32[8,1], index: 7, kind: output, shape index: {}]
  %s8 = sld [smem:[#allocation0]]
  $region38: #{discriminator_forward.1} parent=0
    _
  %s10 = ssub.s32 1, %s8
  %s11 = scalar_select 0, %s10, %s8
  %v12 = vstv %s6
  %13 = vst [vmem:[#allocation2] sm:$0x1] %v12
  // Predicated region
  $region2: #{discriminator_forward.1} parent=0 // pred_check
    _
  $region3: #{discriminator_forward.1} parent=0 // pred_check_branch
    %15 = sbr.rel (0) target = $region5
  $region4: #{discriminator_forward.1} parent=0 // pred_region
    _
  $region5: #{discriminator_forward.1} parent=0 // pred_fallthru
    _
  // Predicated region
  $region6: #{discriminator_forward.1} parent=0 // pred_check
    _
  $region7: #{discriminator_forward.1} parent=0 // pred_check_branch
    %17 = sbr.rel (0) target = $region9
  $region8: #{discriminator_forward.1} parent=0 // pred_region
    _
  $region9: #{discriminator_forward.1} parent=0 // pred_fallthru
    _
  // Predicated region
  $region10: #{discriminator_forward.1} parent=0 // pred_check
    _
  $region11: #{discriminator_forward.1} parent=0 // pred_check_branch
    %19 = sbr.rel (0) target = $region13
  $region12: #{discriminator_forward.1} parent=0 // pred_region
    _
  $region13: #{discriminator_forward.1} parent=0 // pred_fallthru
    _
  // Predicated region
  $region14: #{discriminator_forward.1} parent=0 // pred_check
    _
  $region15: #{discriminator_forward.1} parent=0 // pred_check_branch
    %21 = sbr.rel (0) target = $region17
  $region16: #{discriminator_forward.1} parent=0 // pred_region
    _
  $region17: #{discriminator_forward.1} parent=0 // pred_fallthru
    _
  // Predicated region
  $region18: #{discriminator_forward.1} parent=0 // pred_check
    _
  $region19: #{discriminator_forward.1} parent=0 // pred_check_branch
    %23 = sbr.rel (0) target = $region21
  $region20: #{discriminator_forward.1} parent=0 // pred_region
    _
  $region21: #{discriminator_forward.1} parent=0 // pred_fallthru
    _
  // Predicated region
  $region22: #{discriminator_forward.1} parent=0 // pred_check
    _
  $region23: #{discriminator_forward.1} parent=0 // pred_check_branch
    %25 = sbr.rel (0) target = $region25
  $region24: #{discriminator_forward.1} parent=0 // pred_region
    _
  $region25: #{discriminator_forward.1} parent=0 // pred_fallthru
    _
  // Predicated region
  $region26: #{discriminator_forward.1} parent=0 // pred_check
    _
  $region27: #{discriminator_forward.1} parent=0 // pred_check_branch
    %27 = sbr.rel (0) target = $region29
  $region28: #{discriminator_forward.1} parent=0 // pred_region
    _
  $region29: #{discriminator_forward.1} parent=0 // pred_fallthru
    _
  %v29 = vld [vmem:[%s0] sm:$0xff]
  %v30 = vpack.c.bf16 %v29, %v29
  %v31 = vld [vmem:[%s1] sm:$0xf]
  %v32 = vld [vmem:[%s1 + $0x4] sm:$0xf]
  %v33 = vld [vmem:[%s2] sm:$0x1]
  %v35 = vlaneseq
  %v36 = vshrl.u32 %v35, 7
  %v37 = vsub.s32 0, %v36
  %v38 = vrot.slane %v33, %v37
  %v42 = vunpack.c.l.b16 %v31
  %v43 = vunpack.c.l.b16 %v32
  %v44 = vpack.c.b16 %v43, %v42
  %vm46 = vcmask 130048
  %v48 = vsel %vm46, %v30, 0
  %50 = vmatprep.subr.bf16.mxu0 0
  %51 = vmatpush1.bf16.msra.mxu0 %v44
  %52 = vmatprep.subr.bf16.mxu0 0
  %53 = vmatpush1.bf16.msra.mxu0 0
  %54 = vmatprep.subr.bf16.mxu0 0
  %55 = vmatpush1.bf16.msra.mxu0 0
  %56 = vmatprep.subr.bf16.mxu0 0
  %57 = vmatpush1.bf16.msra.mxu0 0
  %58 = vmatprep.subr.bf16.mxu0 0
  %59 = vmatpush1.bf16.msra.mxu0 0
  %60 = vmatprep.subr.bf16.mxu0 0
  %61 = vmatpush1.bf16.msra.mxu0 0
  %62 = vmatprep.subr.bf16.mxu0 0
  %63 = vmatpush1.bf16.msra.mxu0 0
  %64 = vmatprep.subr.bf16.mxu0 0
  %65 = vmatpush1.bf16.msra.mxu0 0
  %66 = vmatprep.subr.bf16.mxu0 0
  %67 = vmatpush1.bf16.msra.mxu0 0
  %68 = vmatprep.subr.bf16.mxu0 0
  %69 = vmatpush1.bf16.msra.mxu0 0
  %70 = vmatprep.subr.bf16.mxu0 0
  %71 = vmatpush1.bf16.msra.mxu0 0
  %72 = vmatprep.subr.bf16.mxu0 0
  %73 = vmatpush1.bf16.msra.mxu0 0
  %74 = vmatprep.subr.bf16.mxu0 0
  %75 = vmatpush1.bf16.msra.mxu0 0
  %76 = vmatprep.subr.bf16.mxu0 0
  %77 = vmatpush1.bf16.msra.mxu0 0
  %78 = vmatprep.subr.bf16.mxu0 0
  %79 = vmatpush1.bf16.msra.mxu0 0
  %80 = vmatprep.subr.bf16.mxu0 0
  %81 = vmatpush1.bf16.msra.mxu0 0
  %82 = vmatprep.mubr.bf16.mxu0 0
  %83 = vmatmul.mubr.bf16.gmra.mrb[0].mxu0 %v48
  %v84 = vpop.f32.mrb[0].mxu0
  %v85 = vadd.f32 %v38, %v84
  %v86 = vpop.f32.mrb[0].mxu0
  %v87 = vpop.f32.mrb[0].mxu0
  %v88 = vpop.f32.mrb[0].mxu0
  %89 = vdwg.mxu0
  %v90 = vmul.f32 %v85, 0.2
  %v91 = vmax.f32 %v85, %v90
  %v92 = vpack.c.bf16 %v91, %v91
  %v93 = vld [vmem:[%s3] sm:$0xf]
  %v94 = vld [vmem:[%s3 + $0x4] sm:$0xf]
  %v95 = vld [vmem:[%s3 + $0x8] sm:$0xf]
  %v96 = vld [vmem:[%s3 + $0xc] sm:$0xf]
  %v97 = vld [vmem:[%s3 + $0x10] sm:$0xf]
  %v98 = vld [vmem:[%s3 + $0x14] sm:$0xf]
  %v99 = vld [vmem:[%s3 + $0x18] sm:$0xf]
  %v100 = vld [vmem:[%s3 + $0x1c] sm:$0xf]
  %v101 = vld [vmem:[%s3 + $0x20] sm:$0xf]
  %v102 = vld [vmem:[%s3 + $0x24] sm:$0xf]
  %v103 = vld [vmem:[%s3 + $0x28] sm:$0xf]
  %v104 = vld [vmem:[%s3 + $0x2c] sm:$0xf]
  %v105 = vld [vmem:[%s3 + $0x30] sm:$0xf]
  %v106 = vld [vmem:[%s3 + $0x34] sm:$0xf]
  %v107 = vld [vmem:[%s3 + $0x38] sm:$0xf]
  %v108 = vld [vmem:[%s3 + $0x3c] sm:$0xf]
  %v109 = vld [vmem:[%s4] sm:$0x1]
  %v111 = vlaneseq
  %v112 = vshrl.u32 %v111, 7
  %v113 = vsub.s32 0, %v112
  %v114 = vrot.slane %v109, %v113
  %v132 = vunpack.c.l.b16 %v93
  %v133 = vunpack.c.l.b16 %v94
  %v134 = vunpack.c.l.b16 %v95
  %v135 = vunpack.c.l.b16 %v96
  %v136 = vunpack.c.l.b16 %v97
  %v137 = vunpack.c.l.b16 %v98
  %v138 = vunpack.c.l.b16 %v99
  %v139 = vunpack.c.l.b16 %v100
  %v140 = vunpack.c.l.b16 %v101
  %v141 = vunpack.c.l.b16 %v102
  %v142 = vunpack.c.l.b16 %v103
  %v143 = vunpack.c.l.b16 %v104
  %v144 = vunpack.c.l.b16 %v105
  %v145 = vunpack.c.l.b16 %v106
  %v146 = vunpack.c.l.b16 %v107
  %v147 = vunpack.c.l.b16 %v108
  %v148 = vpack.c.b16 %v133, %v132
  %v149 = vpack.c.b16 %v135, %v134
  %v150 = vpack.c.b16 %v137, %v136
  %v151 = vpack.c.b16 %v139, %v138
  %v152 = vpack.c.b16 %v141, %v140
  %v153 = vpack.c.b16 %v143, %v142
  %v154 = vpack.c.b16 %v145, %v144
  %v155 = vpack.c.b16 %v147, %v146
  %164 = vmatprep.subr.bf16.mxu0 0
  %165 = vmatpush1.bf16.msra.mxu0 %v148
  %166 = vmatprep.subr.bf16.mxu0 0
  %167 = vmatpush1.bf16.msra.mxu0 %v149
  %168 = vmatprep.subr.bf16.mxu0 0
  %169 = vmatpush1.bf16.msra.mxu0 %v150
  %170 = vmatprep.subr.bf16.mxu0 0
  %171 = vmatpush1.bf16.msra.mxu0 %v151
  %172 = vmatprep.subr.bf16.mxu0 0
  %173 = vmatpush1.bf16.msra.mxu0 %v152
  %174 = vmatprep.subr.bf16.mxu0 0
  %175 = vmatpush1.bf16.msra.mxu0 %v153
  %176 = vmatprep.subr.bf16.mxu0 0
  %177 = vmatpush1.bf16.msra.mxu0 %v154
  %178 = vmatprep.subr.bf16.mxu0 0
  %179 = vmatpush1.bf16.msra.mxu0 %v155
  %180 = vmatprep.subr.bf16.mxu0 0
  %181 = vmatpush1.bf16.msra.mxu0 0
  %182 = vmatprep.subr.bf16.mxu0 0
  %183 = vmatpush1.bf16.msra.mxu0 0
  %184 = vmatprep.subr.bf16.mxu0 0
  %185 = vmatpush1.bf16.msra.mxu0 0
  %186 = vmatprep.subr.bf16.mxu0 0
  %187 = vmatpush1.bf16.msra.mxu0 0
  %188 = vmatprep.subr.bf16.mxu0 0
  %189 = vmatpush1.bf16.msra.mxu0 0
  %190 = vmatprep.subr.bf16.mxu0 0
  %191 = vmatpush1.bf16.msra.mxu0 0
  %192 = vmatprep.subr.bf16.mxu0 0
  %193 = vmatpush1.bf16.msra.mxu0 0
  %194 = vmatprep.subr.bf16.mxu0 0
  %195 = vmatpush1.bf16.msra.mxu0 0
  %196 = vmatprep.mubr.bf16.mxu0 0
  %197 = vmatmul.mubr.bf16.gmra.mrb[0].mxu0 %v92
  %v198 = vpop.f32.mrb[0].mxu0
  %v199 = vadd.f32 %v114, %v198
  %v200 = vpop.f32.mrb[0].mxu0
  %v201 = vpop.f32.mrb[0].mxu0
  %v202 = vpop.f32.mrb[0].mxu0
  %203 = vdwg.mxu0
  %v204 = vmul.f32 %v199, 0.2
  %v205 = vmax.f32 %v199, %v204
  %v206 = vld [vmem:[%s5] sm:$0x1]
  %v208 = vlaneseq
  %v209 = vshrl.u32 %v208, 7
  %v210 = vsub.s32 0, %v209
  %v211 = vrot.slane %v206, %v210
  %v213 = vmul.f32 %v205, %v211
  %vm214 = vcmask 261120
  %v215 = vsel %vm214, %v213, 0.0
  %216 = vadd.xlane.f32.xlu0 %v215
  %v217 = vpop.xlane.xlu0 %216
  %v218 = vld [vmem:[#allocation2] sm:$0x1]
  %v220 = vlaneseq
  %v221 = vshrl.u32 %v220, 7
  %v222 = vsub.s32 0, %v221
  %v223 = vrot.slane %v218, %v222
  %v225 = vadd.f32 %v217, %v223
  %v226 = vsub.f32 0.0, %v225
  %v227 = vmul.f32 %v226, 1.442695
  %v228 = vpow.pop %v227
  %v229 = vadd.f32 %v228, 1.0
  %v230 = vrcp.pop %v229
  %vm231 = vcmask 7168
  %232 = vst.msk [vmem:[%s7] sm:$0xff] %vm231, %v230
  // Predicated region
  $region30: #{discriminator_forward.1} parent=0 // pred_check
    _
  $region31: #{discriminator_forward.1} parent=0 // pred_check_branch
    %234 = sbr.rel (0) target = $region33
  $region32: #{discriminator_forward.1} parent=0 // pred_region
    _
  $region33: #{discriminator_forward.1} parent=0 // pred_fallthru
    _
  // Predicated region
  $region34: #{discriminator_forward.1} parent=0 // pred_check
    _
  $region35: #{discriminator_forward.1} parent=0 // pred_check_branch
    %236 = sbr.rel (0) target = $region37
  $region36: #{discriminator_forward.1} parent=0 // pred_region
    _
  $region37: #{discriminator_forward.1} parent=0 // pred_fallthru
    _

</llo_original>
